<compile_context>
chip_gen: v7x
topology: tpu7x:2x2x1
jax: 0.10.0
libtpu: 0.0.40
codegen_flags: <defaults>
</compile_context>

<pallas_src>
import functools

import jax
import jax.numpy as jnp
from jax.experimental import pallas as pl
from jax.experimental.pallas import tpu as pltpu


HIDDEN = 64


def _pi_mlp_kernel(x_ref,
                   w1_ref, b1_ref,
                   w2_ref, b2_ref,
                   w3_ref, b3_ref,
                   w4_ref, b4_ref,
                   out_ref,
                   *, compute_dtype):
    """Fused 4-layer MLP (3 hidden ReLU layers) for one batch tile.

    x arrives in f32 and is cast to `compute_dtype` in-kernel (VPU work hidden
    under the pipeline).  All matmuls run on the MXU with f32 accumulation;
    bias add + ReLU stay in f32 and activations are cast back to
    `compute_dtype` before the next MXU push.
    """
    h = x_ref[...].astype(compute_dtype)

    h = jnp.dot(h, w1_ref[...], preferred_element_type=jnp.float32) + b1_ref[...]
    h = jnp.maximum(h, 0.0).astype(compute_dtype)

    h = jnp.dot(h, w2_ref[...], preferred_element_type=jnp.float32) + b2_ref[...]
    h = jnp.maximum(h, 0.0).astype(compute_dtype)

    h = jnp.dot(h, w3_ref[...], preferred_element_type=jnp.float32) + b3_ref[...]
    h = jnp.maximum(h, 0.0).astype(compute_dtype)

    out = jnp.dot(h, w4_ref[...], preferred_element_type=jnp.float32) + b4_ref[...]
    out_ref[...] = out.astype(out_ref.dtype)


def _round_up(x, m):
    return (x + m - 1) // m * m


def _pick_batch_tile(B, block_b, min_steps=2):
    """Batch tile: multiple of 8 (sublane), <= block_b, >= min_steps grid steps
    for large B (keeps both v7x TensorCores busy)."""
    if B <= 8:
        # Single block equal to the full batch dim (exempt from the /8 rule).
        return B
    return min(block_b, _round_up(pl.cdiv(B, min_steps), 8))


def pi_forward(x, params, *, compute_dtype=jnp.bfloat16, block_b=8192,
               out_dtype=jnp.float32):
    """Run the Pi MLP forward pass as a single fused, batch-tiled Pallas kernel.

    x:      [B, in_dim] float32 (passed to the kernel uncast; cast happens
            in-kernel).
    params: tuple (w1, b1, w2, b2, w3, b3, w4, b4);
            w_i stored as [in_features, out_features], b_i as [1, out_features].
    """
    B, in_dim = x.shape
    out_dim = params[-1].shape[-1]

    # Weights go to the MXU-native compute dtype; biases stay f32 (added to the
    # f32 MXU accumulator inside the kernel). ~25 KiB total -> VMEM-resident.
    cast_params = [
        p.astype(compute_dtype) if i % 2 == 0 else p.astype(jnp.float32)
        for i, p in enumerate(params)
    ]

    tb = _pick_batch_tile(B, block_b)
    grid = (pl.cdiv(B, tb),)   # partial last tile handled by masked writeback

    x_spec = pl.BlockSpec((tb, in_dim), lambda i: (i, 0))
    const_spec = lambda shape: pl.BlockSpec(shape, lambda i: (0, 0))
    in_specs = [x_spec] + [const_spec(p.shape) for p in cast_params]
    out_spec = pl.BlockSpec((tb, out_dim), lambda i: (i, 0))

    kernel = functools.partial(_pi_mlp_kernel, compute_dtype=compute_dtype)

    flops = 2 * B * (in_dim * HIDDEN + 2 * HIDDEN * HIDDEN + HIDDEN * out_dim)
    bytes_accessed = (
        x.size * x.dtype.itemsize
        + sum(int(p.size) * p.dtype.itemsize for p in cast_params)
        + B * out_dim * jnp.dtype(out_dtype).itemsize
    )
    cost = pl.CostEstimate(flops=flops, transcendentals=0,
                           bytes_accessed=int(bytes_accessed))

    out = pl.pallas_call(
        kernel,
        out_shape=jax.ShapeDtypeStruct((B, out_dim), out_dtype),
        grid=grid,
        in_specs=in_specs,
        out_specs=out_spec,
        compiler_params=pltpu.CompilerParams(
            # Batch steps are independent -> shard across v7x's 2 TensorCores.
            dimension_semantics=("parallel",)),
        cost_estimate=cost,
    )(x, *cast_params)

    return out


def init_pi_params(key, in_dim, out_dim, hidden=HIDDEN):
    """Deterministic parameter init (PyTorch-Linear-style uniform bounds)."""
    dims = [(in_dim, hidden), (hidden, hidden), (hidden, hidden), (hidden, out_dim)]
    params = []
    for fan_in, fan_out in dims:
        kw, kb, key = jax.random.split(key, 3)
        bound = 1.0 / jnp.sqrt(jnp.float32(fan_in))
        # Stored as [in, out] (already transposed relative to torch's [out, in]).
        w = jax.random.uniform(kw, (fan_in, fan_out), jnp.float32, -bound, bound)
        b = jax.random.uniform(kb, (1, fan_out), jnp.float32, -bound, bound)
        params.extend([w, b])
    return tuple(params)


def pi_forward_ref(x, params, compute_dtype=jnp.float32):
    """Plain-JAX reference using the same operand casts as the kernel."""
    w1, b1, w2, b2, w3, b3, w4, b4 = [
        p.astype(compute_dtype) if i % 2 == 0 else p.astype(jnp.float32)
        for i, p in enumerate(params)
    ]
    h = x.astype(compute_dtype)
    h = jnp.dot(h, w1, preferred_element_type=jnp.float32) + b1
    h = jnp.maximum(h, 0.0).astype(compute_dtype)
    h = jnp.dot(h, w2, preferred_element_type=jnp.float32) + b2
    h = jnp.maximum(h, 0.0).astype(compute_dtype)
    h = jnp.dot(h, w3, preferred_element_type=jnp.float32) + b3
    h = jnp.maximum(h, 0.0).astype(compute_dtype)
    return jnp.dot(h, w4, preferred_element_type=jnp.float32) + b4


# TODO(synk): get_logits/act/best_action (Categorical sampling, Python-side
# log_prob bookkeeping) are host-side policy logic, not part of forward(); only
# the MLP forward pass is implemented as a kernel.


if __name__ == "__main__":
    key = jax.random.PRNGKey(0)
    kx, kp = jax.random.split(key)

    B, in_dim, out_dim = 8, 32, 16
    x = jax.random.normal(kx, (B, in_dim), dtype=jnp.float32)
    params = init_pi_params(kp, in_dim, out_dim)

    # f32 compute path: must match the plain-JAX f32 reference tightly.
    out_f32 = jax.block_until_ready(pi_forward(x, params, compute_dtype=jnp.float32))
    ref_f32 = pi_forward_ref(x, params, compute_dtype=jnp.float32)
    assert out_f32.shape == (B, out_dim)
    assert jnp.allclose(out_f32, ref_f32, atol=1e-5, rtol=1e-5), "f32 mismatch vs reference"

    # bf16 compute path (default; MXU-native on v6e/v7x): compare against a
    # reference using identical casts, plus a loose sanity check vs full f32.
    out_bf16 = jax.block_until_ready(pi_forward(x, params))
    ref_bf16 = pi_forward_ref(x, params, compute_dtype=jnp.bfloat16)
    assert jnp.allclose(out_bf16, ref_bf16, atol=1e-3, rtol=1e-3), "bf16 mismatch vs matched ref"
    assert jnp.allclose(out_bf16, ref_f32, atol=5e-2, rtol=5e-2), "bf16 path drifted from f32 ref"

    # Non-multiple-of-8 batch: exercises the multi-step grid + masked partial
    # last block (grid=(2,), last tile has 13 valid rows).
    B2 = 37
    x2 = jax.random.normal(kx, (B2, in_dim), dtype=jnp.float32)
    out2 = jax.block_until_ready(pi_forward(x2, params, compute_dtype=jnp.float32))
    ref2 = pi_forward_ref(x2, params, compute_dtype=jnp.float32)
    assert out2.shape == (B2, out_dim)
    assert jnp.allclose(out2, ref2, atol=1e-5, rtol=1e-5), "partial-block mismatch vs reference"

    # Tiny batch (< 8 rows): block equals the full batch dim, single grid step.
    B3 = 4
    x3 = jax.random.normal(kx, (B3, in_dim), dtype=jnp.float32)
    out3 = jax.block_until_ready(pi_forward(x3, params, compute_dtype=jnp.float32))
    ref3 = pi_forward_ref(x3, params, compute_dtype=jnp.float32)
    assert out3.shape == (B3, out_dim)
    assert jnp.allclose(out3, ref3, atol=1e-5, rtol=1e-5), "tiny-batch mismatch vs reference"

    print("KERNEL_OK")
</pallas_src>

<mosaic_0001>
module attributes {stable_mosaic.version = 11 : i64} {
  func.func @_pi_mlp_kernel(%arg0: i32, %arg1: memref<8x32xf32, #tpu.memory_space<vmem>>, %arg2: memref<32x64xf32, #tpu.memory_space<vmem>>, %arg3: memref<1x64xf32, #tpu.memory_space<vmem>>, %arg4: memref<64x64xf32, #tpu.memory_space<vmem>>, %arg5: memref<1x64xf32, #tpu.memory_space<vmem>>, %arg6: memref<64x64xf32, #tpu.memory_space<vmem>>, %arg7: memref<1x64xf32, #tpu.memory_space<vmem>>, %arg8: memref<64x16xf32, #tpu.memory_space<vmem>>, %arg9: memref<1x16xf32, #tpu.memory_space<vmem>>, %arg10: memref<8x16xf32, #tpu.memory_space<vmem>>) attributes {dimension_semantics = [#tpu.dimension_semantics<parallel>], iteration_bounds = array<i64: 1>, scalar_prefetch = 0 : i64, scratch_operands = 0 : i64, tpu.core_type = #tpu.core_type<tc>, window_params = [{transform_indices = @transform_0, window_bounds = array<i64: 8, 32>}, {pipeline_mode = #tpu.pipeline_mode<synchronous>, transform_indices = @transform_1, window_bounds = array<i64: 32, 64>}, {pipeline_mode = #tpu.pipeline_mode<synchronous>, transform_indices = @transform_2, window_bounds = array<i64: 1, 64>}, {pipeline_mode = #tpu.pipeline_mode<synchronous>, transform_indices = @transform_3, window_bounds = array<i64: 64, 64>}, {pipeline_mode = #tpu.pipeline_mode<synchronous>, transform_indices = @transform_4, window_bounds = array<i64: 1, 64>}, {pipeline_mode = #tpu.pipeline_mode<synchronous>, transform_indices = @transform_5, window_bounds = array<i64: 64, 64>}, {pipeline_mode = #tpu.pipeline_mode<synchronous>, transform_indices = @transform_6, window_bounds = array<i64: 1, 64>}, {pipeline_mode = #tpu.pipeline_mode<synchronous>, transform_indices = @transform_7, window_bounds = array<i64: 64, 16>}, {pipeline_mode = #tpu.pipeline_mode<synchronous>, transform_indices = @transform_8, window_bounds = array<i64: 1, 16>}, {transform_indices = @transform_9, window_bounds = array<i64: 8, 16>}]} {
    %c0 = arith.constant 0 : index
    %c0_0 = arith.constant 0 : index
    %0 = vector.load %arg1[%c0, %c0_0] : memref<8x32xf32, #tpu.memory_space<vmem>>, vector<8x32xf32>
    %c0_1 = arith.constant 0 : index
    %c0_2 = arith.constant 0 : index
    %1 = vector.load %arg2[%c0_1, %c0_2] : memref<32x64xf32, #tpu.memory_space<vmem>>, vector<32x64xf32>
    %cst = arith.constant dense<0.000000e+00> : vector<8x64xf32>
    %2 = tpu.matmul %0, %1, %cst {dimension_numbers = #tpu.dot_dimension_numbers<[1], [0], [0], [1], [0, 0, 1, 1], [], []>} : vector<8x32xf32>, vector<32x64xf32>, vector<8x64xf32> -> vector<8x64xf32>
    %c0_3 = arith.constant 0 : index
    %c0_4 = arith.constant 0 : index
    %3 = vector.load %arg3[%c0_3, %c0_4] : memref<1x64xf32, #tpu.memory_space<vmem>>, vector<1x64xf32>
    %4 = vector.broadcast %3 : vector<1x64xf32> to vector<8x64xf32>
    %5 = arith.addf %2, %4 : vector<8x64xf32>
    %cst_5 = arith.constant 0.000000e+00 : f32
    %6 = vector.broadcast %cst_5 : f32 to vector<8x64xf32>
    %7 = arith.maximumf %5, %6 : vector<8x64xf32>
    %c0_6 = arith.constant 0 : index
    %c0_7 = arith.constant 0 : index
    %8 = vector.load %arg4[%c0_6, %c0_7] : memref<64x64xf32, #tpu.memory_space<vmem>>, vector<64x64xf32>
    %cst_8 = arith.constant dense<0.000000e+00> : vector<8x64xf32>
    %9 = tpu.matmul %7, %8, %cst_8 {dimension_numbers = #tpu.dot_dimension_numbers<[1], [0], [0], [1], [0, 0, 1, 1], [], []>} : vector<8x64xf32>, vector<64x64xf32>, vector<8x64xf32> -> vector<8x64xf32>
    %c0_9 = arith.constant 0 : index
    %c0_10 = arith.constant 0 : index
    %10 = vector.load %arg5[%c0_9, %c0_10] : memref<1x64xf32, #tpu.memory_space<vmem>>, vector<1x64xf32>
    %11 = vector.broadcast %10 : vector<1x64xf32> to vector<8x64xf32>
    %12 = arith.addf %9, %11 : vector<8x64xf32>
    %cst_11 = arith.constant 0.000000e+00 : f32
    %13 = vector.broadcast %cst_11 : f32 to vector<8x64xf32>
    %14 = arith.maximumf %12, %13 : vector<8x64xf32>
    %c0_12 = arith.constant 0 : index
    %c0_13 = arith.constant 0 : index
    %15 = vector.load %arg6[%c0_12, %c0_13] : memref<64x64xf32, #tpu.memory_space<vmem>>, vector<64x64xf32>
    %cst_14 = arith.constant dense<0.000000e+00> : vector<8x64xf32>
    %16 = tpu.matmul %14, %15, %cst_14 {dimension_numbers = #tpu.dot_dimension_numbers<[1], [0], [0], [1], [0, 0, 1, 1], [], []>} : vector<8x64xf32>, vector<64x64xf32>, vector<8x64xf32> -> vector<8x64xf32>
    %c0_15 = arith.constant 0 : index
    %c0_16 = arith.constant 0 : index
    %17 = vector.load %arg7[%c0_15, %c0_16] : memref<1x64xf32, #tpu.memory_space<vmem>>, vector<1x64xf32>
    %18 = vector.broadcast %17 : vector<1x64xf32> to vector<8x64xf32>
    %19 = arith.addf %16, %18 : vector<8x64xf32>
    %cst_17 = arith.constant 0.000000e+00 : f32
    %20 = vector.broadcast %cst_17 : f32 to vector<8x64xf32>
    %21 = arith.maximumf %19, %20 : vector<8x64xf32>
    %c0_18 = arith.constant 0 : index
    %c0_19 = arith.constant 0 : index
    %22 = vector.load %arg8[%c0_18, %c0_19] : memref<64x16xf32, #tpu.memory_space<vmem>>, vector<64x16xf32>
    %cst_20 = arith.constant dense<0.000000e+00> : vector<8x16xf32>
    %23 = tpu.matmul %21, %22, %cst_20 {dimension_numbers = #tpu.dot_dimension_numbers<[1], [0], [0], [1], [0, 0, 1, 1], [], []>} : vector<8x64xf32>, vector<64x16xf32>, vector<8x16xf32> -> vector<8x16xf32>
    %c0_21 = arith.constant 0 : index
    %c0_22 = arith.constant 0 : index
    %24 = vector.load %arg9[%c0_21, %c0_22] : memref<1x16xf32, #tpu.memory_space<vmem>>, vector<1x16xf32>
    %25 = vector.broadcast %24 : vector<1x16xf32> to vector<8x16xf32>
    %26 = arith.addf %23, %25 : vector<8x16xf32>
    %c0_23 = arith.constant 0 : index
    %c0_24 = arith.constant 0 : index
    %27 = vector.load %arg10[%c0_23, %c0_24] : memref<8x16xf32, #tpu.memory_space<vmem>>, vector<8x16xf32>
    tpu.vector_store %arg10[%c0_23, %c0_24], %26 {strides = array<i32>} : memref<8x16xf32, #tpu.memory_space<vmem>>, vector<8x16xf32>,
    return
  }
  func.func @transform_0(%arg0: i32) -> (i32, i32) {
    %c0_i32 = arith.constant 0 : i32
    %c0_i32_0 = arith.constant 0 : i32
    return %arg0, %c0_i32 : i32, i32
  }
  func.func @transform_1(%arg0: i32) -> (i32, i32) {
    %c0_i32 = arith.constant 0 : i32
    %c0_i32_0 = arith.constant 0 : i32
    %c0_i32_1 = arith.constant 0 : i32
    return %c0_i32, %c0_i32_0 : i32, i32
  }
  func.func @transform_2(%arg0: i32) -> (i32, i32) {
    %c0_i32 = arith.constant 0 : i32
    %c0_i32_0 = arith.constant 0 : i32
    %c0_i32_1 = arith.constant 0 : i32
    return %c0_i32, %c0_i32_0 : i32, i32
  }
  func.func @transform_3(%arg0: i32) -> (i32, i32) {
    %c0_i32 = arith.constant 0 : i32
    %c0_i32_0 = arith.constant 0 : i32
    %c0_i32_1 = arith.constant 0 : i32
    return %c0_i32, %c0_i32_0 : i32, i32
  }
  func.func @transform_4(%arg0: i32) -> (i32, i32) {
    %c0_i32 = arith.constant 0 : i32
    %c0_i32_0 = arith.constant 0 : i32
    %c0_i32_1 = arith.constant 0 : i32
    return %c0_i32, %c0_i32_0 : i32, i32
  }
  func.func @transform_5(%arg0: i32) -> (i32, i32) {
    %c0_i32 = arith.constant 0 : i32
    %c0_i32_0 = arith.constant 0 : i32
    %c0_i32_1 = arith.constant 0 : i32
    return %c0_i32, %c0_i32_0 : i32, i32
  }
  func.func @transform_6(%arg0: i32) -> (i32, i32) {
    %c0_i32 = arith.constant 0 : i32
    %c0_i32_0 = arith.constant 0 : i32
    %c0_i32_1 = arith.constant 0 : i32
    return %c0_i32, %c0_i32_0 : i32, i32
  }
  func.func @transform_7(%arg0: i32) -> (i32, i32) {
    %c0_i32 = arith.constant 0 : i32
    %c0_i32_0 = arith.constant 0 : i32
    %c0_i32_1 = arith.constant 0 : i32
    return %c0_i32, %c0_i32_0 : i32, i32
  }
  func.func @transform_8(%arg0: i32) -> (i32, i32) {
    %c0_i32 = arith.constant 0 : i32
    %c0_i32_0 = arith.constant 0 : i32
    %c0_i32_1 = arith.constant 0 : i32
    return %c0_i32, %c0_i32_0 : i32, i32
  }
  func.func @transform_9(%arg0: i32) -> (i32, i32) {
    %c0_i32 = arith.constant 0 : i32
    %c0_i32_0 = arith.constant 0 : i32
    return %arg0, %c0_i32 : i32, i32
  }
}

</mosaic_0001>

<llo_original>
// kernel: tpu_custom_call.1
$region0: #{tpu_custom_call.1}
  #allocation0 [shape = 'u32[]', space=smem, size = 0x4, offset = 0x4, fixed_abs, tag = 'smem constant byte address 0x4 - core index']
  #allocation1 [shape = 'u32[144,128]{1,0:T(1,128)}', space=vmem, size = 0x12000, scoped, tag = 'internal scratch']
  %s0 = inlined_call_operand.vmem [shape: f32[8,32], index: 0, kind: input, shape index: {}]
  %s1 = inlined_call_operand.hbm [shape: f32[32,64], index: 1, kind: input, shape index: {}]
  %s2 = inlined_call_operand.vmem [shape: f32[1,64], index: 2, kind: input, shape index: {}]
  %s3 = inlined_call_operand.vmem [shape: f32[64,64], index: 3, kind: input, shape index: {}]
  %s4 = inlined_call_operand.vmem [shape: f32[1,64], index: 4, kind: input, shape index: {}]
  %s5 = inlined_call_operand.hbm [shape: f32[64,64], index: 5, kind: input, shape index: {}]
  %s6 = inlined_call_operand.vmem [shape: f32[1,64], index: 6, kind: input, shape index: {}]
  %s7 = inlined_call_operand.vmem [shape: f32[64,16], index: 7, kind: input, shape index: {}]
  %s8 = inlined_call_operand.vmem [shape: f32[1,16], index: 8, kind: input, shape index: {}]
  %s9 = inlined_call_operand.hbm [shape: f32[8,16], index: 9, kind: output, shape index: {}]
  %s10 = sld [smem:[#allocation0]]
  $region54: #{tpu_custom_call.1} parent=0
    _
  %s12 = ssub.s32 1, %s10
  %s13 = scalar_select 0, %s12, %s10
  $region1: #{tpu_custom_call.1} parent=0
    #allocation2 [shape = 'u8[16384]{0}', space=vmem, size = 0x4000, scoped, tag = 'input window, operand 1, single buffered']
    #allocation3 [shape = 's32[1]{0}', space=sflag, size = 0x4, scoped, tag = 'scoped memory for tpu_custom_call.1']
    #allocation4 [shape = 's32[1]{0}', space=sflag, size = 0x4, scoped, tag = 'scoped memory for tpu_custom_call.1']
    #allocation5 [shape = 'u8[32768]{0}', space=vmem, size = 0x8000, scoped, tag = 'input window, operand 5, single buffered']
    #allocation6 [shape = 's32[1]{0}', space=sflag, size = 0x4, scoped, tag = 'scoped memory for tpu_custom_call.1']
    #allocation7 [shape = 'u8[4096]{0}', space=vmem, size = 0x1000, scoped, tag = 'output window, operand 0, single buffered']
    %14 = vsyncpa [#allocation3], 0
    %15 = vsyncpa [#allocation6], 0
    %16 = vsyncpa [#allocation4], 0
    // Predicated region
    $region2: #{tpu_custom_call.1} parent=1 // pred_check
      _
    $region3: #{tpu_custom_call.1} parent=1 // pred_check_branch
      %18 = sbr.rel (0) target = $region5
    $region4: #{tpu_custom_call.1} parent=1 // pred_region
      _
    $region5: #{tpu_custom_call.1} parent=1 // pred_fallthru
      _
    // Predicated region
    $region6: #{tpu_custom_call.1} parent=1 // pred_check
      _
    $region7: #{tpu_custom_call.1} parent=1 // pred_check_branch
      %20 = sbr.rel (0) target = $region9
    $region8: #{tpu_custom_call.1} parent=1 // pred_region
      %s22 = ssub.s32 512, 512
      %23 = vsyncadd [#allocation3], %s22
      %s24 = sshll.u32 [#allocation2], 4
      %s25 = int_to_ptr.vmem [resolvable:$true] %s24
      %30 = dma.hbm_to_vmem [thread:$0]  %s1, 512, %s25, [#allocation3], 128, 128, 8
    $region9: #{tpu_custom_call.1} parent=1 // pred_fallthru
      _
    // Predicated region
    $region10: #{tpu_custom_call.1} parent=1 // pred_check
      _
    $region11: #{tpu_custom_call.1} parent=1 // pred_check_branch
      %32 = sbr.rel (0) target = $region13
    $region12: #{tpu_custom_call.1} parent=1 // pred_region
      _
    $region13: #{tpu_custom_call.1} parent=1 // pred_fallthru
      _
    // Predicated region
    $region14: #{tpu_custom_call.1} parent=1 // pred_check
      _
    $region15: #{tpu_custom_call.1} parent=1 // pred_check_branch
      %34 = sbr.rel (0) target = $region17
    $region16: #{tpu_custom_call.1} parent=1 // pred_region
      _
    $region17: #{tpu_custom_call.1} parent=1 // pred_fallthru
      _
    // Predicated region
    $region18: #{tpu_custom_call.1} parent=1 // pred_check
      _
    $region19: #{tpu_custom_call.1} parent=1 // pred_check_branch
      %36 = sbr.rel (0) target = $region21
    $region20: #{tpu_custom_call.1} parent=1 // pred_region
      _
    $region21: #{tpu_custom_call.1} parent=1 // pred_fallthru
      _
    // Predicated region
    $region22: #{tpu_custom_call.1} parent=1 // pred_check
      _
    $region23: #{tpu_custom_call.1} parent=1 // pred_check_branch
      %38 = sbr.rel (0) target = $region25
    $region24: #{tpu_custom_call.1} parent=1 // pred_region
      %s40 = ssub.s32 1024, 1024
      %41 = vsyncadd [#allocation6], %s40
      %s42 = sshll.u32 [#allocation5], 4
      %s43 = int_to_ptr.vmem [resolvable:$true] %s42
      %48 = dma.hbm_to_vmem [thread:$0]  %s5, 1024, %s43, [#allocation6], 128, 128, 8
    $region25: #{tpu_custom_call.1} parent=1 // pred_fallthru
      _
    // Predicated region
    $region26: #{tpu_custom_call.1} parent=1 // pred_check
      _
    $region27: #{tpu_custom_call.1} parent=1 // pred_check_branch
      %50 = sbr.rel (0) target = $region29
    $region28: #{tpu_custom_call.1} parent=1 // pred_region
      _
    $region29: #{tpu_custom_call.1} parent=1 // pred_fallthru
      _
    // Predicated region
    $region30: #{tpu_custom_call.1} parent=1 // pred_check
      _
    $region31: #{tpu_custom_call.1} parent=1 // pred_check_branch
      %52 = sbr.rel (0) target = $region33
    $region32: #{tpu_custom_call.1} parent=1 // pred_region
      _
    $region33: #{tpu_custom_call.1} parent=1 // pred_fallthru
      _
    // Predicated region
    $region34: #{tpu_custom_call.1} parent=1 // pred_check
      _
    $region35: #{tpu_custom_call.1} parent=1 // pred_check_branch
      %54 = sbr.rel (0) target = $region37
    $region36: #{tpu_custom_call.1} parent=1 // pred_region
      _
    $region37: #{tpu_custom_call.1} parent=1 // pred_fallthru
      _
    // Predicated region
    $region38: #{tpu_custom_call.1} parent=1 // pred_check
      _
    $region39: #{tpu_custom_call.1} parent=1 // pred_check_branch
      %56 = sbr.rel (0) target = $region41
    $region40: #{tpu_custom_call.1} parent=1 // pred_region
      %57 = dma.done [#allocation3], 512
    $region41: #{tpu_custom_call.1} parent=1 // pred_fallthru
      _
    // Predicated region
    $region42: #{tpu_custom_call.1} parent=1 // pred_check
      _
    $region43: #{tpu_custom_call.1} parent=1 // pred_check_branch
      %59 = sbr.rel (0) target = $region45
    $region44: #{tpu_custom_call.1} parent=1 // pred_region
      %60 = dma.done [#allocation6], 1024
    $region45: #{tpu_custom_call.1} parent=1 // pred_fallthru
      _
    %v61 = vld [vmem:[%s0] sm:$0xff]
    %v62 = vld [vmem:[#allocation2] sm:$0xff]
    %v63 = vld [vmem:[#allocation2 + $0x8] sm:$0xff]
    %v64 = vld [vmem:[#allocation2 + $0x10] sm:$0xff]
    %v65 = vld [vmem:[#allocation2 + $0x18] sm:$0xff]
    %v66 = vld [vmem:[%s2] sm:$0x1]
    %v68 = vlaneseq
    %v69 = vshrl.u32 %v68, 7
    %v70 = vsub.s32 0, %v69
    %v71 = vrot.slane %v66, %v70
    %vm73 = vcmask 261120
    %v75 = vsel %vm73, %v61, 0
    %77 = vmatprep.subr.mxu0 0.0
    %78 = vmatpush1.msra.mxu0 %v62
    %79 = vmatprep.subr.mxu0 0.0
    %80 = vmatpush1.msra.mxu0 %v63
    %81 = vmatprep.subr.mxu0 0.0
    %82 = vmatpush1.msra.mxu0 %v64
    %83 = vmatprep.subr.mxu0 0.0
    %84 = vmatpush1.msra.mxu0 %v65
    %85 = vmatprep.subr.mxu0 0.0
    %86 = vmatpush1.msra.mxu0 0.0
    %87 = vmatprep.subr.mxu0 0.0
    %88 = vmatpush1.msra.mxu0 0.0
    %89 = vmatprep.subr.mxu0 0.0
    %90 = vmatpush1.msra.mxu0 0.0
    %91 = vmatprep.subr.mxu0 0.0
    %92 = vmatpush1.msra.mxu0 0.0
    %93 = vmatprep.subr.mxu0 0.0
    %94 = vmatpush1.msra.mxu0 0.0
    %95 = vmatprep.subr.mxu0 0.0
    %96 = vmatpush1.msra.mxu0 0.0
    %97 = vmatprep.subr.mxu0 0.0
    %98 = vmatpush1.msra.mxu0 0.0
    %99 = vmatprep.subr.mxu0 0.0
    %100 = vmatpush1.msra.mxu0 0.0
    %101 = vmatprep.subr.mxu0 0.0
    %102 = vmatpush1.msra.mxu0 0.0
    %103 = vmatprep.subr.mxu0 0.0
    %104 = vmatpush1.msra.mxu0 0.0
    %105 = vmatprep.subr.mxu0 0.0
    %106 = vmatpush1.msra.mxu0 0.0
    %107 = vmatprep.subr.mxu0 0.0
    %108 = vmatpush1.msra.mxu0 0.0
    %109 = vmatprep.subr.mxu0 0.0
    %110 = vmatpush1.msra.mxu0 0.0
    %111 = vmatprep.subr.mxu0 0.0
    %112 = vmatpush1.msra.mxu0 0.0
    %113 = vmatprep.subr.mxu0 0.0
    %114 = vmatpush1.msra.mxu0 0.0
    %115 = vmatprep.subr.mxu0 0.0
    %116 = vmatpush1.msra.mxu0 0.0
    %117 = vmatprep.subr.mxu0 0.0
    %118 = vmatpush1.msra.mxu0 0.0
    %119 = vmatprep.subr.mxu0 0.0
    %120 = vmatpush1.msra.mxu0 0.0
    %121 = vmatprep.subr.mxu0 0.0
    %122 = vmatpush1.msra.mxu0 0.0
    %123 = vmatprep.subr.mxu0 0.0
    %124 = vmatpush1.msra.mxu0 0.0
    %125 = vmatprep.subr.mxu0 0.0
    %126 = vmatpush1.msra.mxu0 0.0
    %127 = vmatprep.subr.mxu0 0.0
    %128 = vmatpush1.msra.mxu0 0.0
    %129 = vmatprep.subr.mxu0 0.0
    %130 = vmatpush1.msra.mxu0 0.0
    %131 = vmatprep.subr.mxu0 0.0
    %132 = vmatpush1.msra.mxu0 0.0
    %133 = vmatprep.subr.mxu0 0.0
    %134 = vmatpush1.msra.mxu0 0.0
    %135 = vmatprep.subr.mxu0 0.0
    %136 = vmatpush1.msra.mxu0 0.0
    %137 = vmatprep.subr.mxu0 0.0
    %138 = vmatpush1.msra.mxu0 0.0
    %139 = vmatprep.subr.mxu0 0.0
    %140 = vmatpush1.msra.mxu0 0.0
    %141 = vmatprep.mubr.f32.mxu0 0.0
    %142 = vmatmul.mubr.f32.gmra.mrb[0].mxu0 %v75
    %v143 = vpop.f32.mrb[0].mxu0
    %v144 = vadd.f32 %v71, %v143
    %v145 = vpop.f32.mrb[0].mxu0
    %146 = vdwg.mxu0
    %v147 = vmax.f32 %v144, 0.0
    %v148 = vld [vmem:[%s3] sm:$0xff]
    %v149 = vld [vmem:[%s3 + $0x8] sm:$0xff]
    %v150 = vld [vmem:[%s3 + $0x10] sm:$0xff]
    %v151 = vld [vmem:[%s3 + $0x18] sm:$0xff]
    %v152 = vld [vmem:[%s3 + $0x20] sm:$0xff]
    %v153 = vld [vmem:[%s3 + $0x28] sm:$0xff]
    %v154 = vld [vmem:[%s3 + $0x30] sm:$0xff]
    %v155 = vld [vmem:[%s3 + $0x38] sm:$0xff]
    %v156 = vld [vmem:[%s4] sm:$0x1]
    %v158 = vlaneseq
    %v159 = vshrl.u32 %v158, 7
    %v160 = vsub.s32 0, %v159
    %v161 = vrot.slane %v156, %v160
    %vm163 = vcmask 523264
    %v165 = vsel %vm163, %v147, 0
    %167 = vmatprep.subr.mxu0 0.0
    %168 = vmatpush1.msra.mxu0 %v148
    %169 = vmatprep.subr.mxu0 0.0
    %170 = vmatpush1.msra.mxu0 %v149
    %171 = vmatprep.subr.mxu0 0.0
    %172 = vmatpush1.msra.mxu0 %v150
    %173 = vmatprep.subr.mxu0 0.0
    %174 = vmatpush1.msra.mxu0 %v151
    %175 = vmatprep.subr.mxu0 0.0
    %176 = vmatpush1.msra.mxu0 %v152
    %177 = vmatprep.subr.mxu0 0.0
    %178 = vmatpush1.msra.mxu0 %v153
    %179 = vmatprep.subr.mxu0 0.0
    %180 = vmatpush1.msra.mxu0 %v154
    %181 = vmatprep.subr.mxu0 0.0
    %182 = vmatpush1.msra.mxu0 %v155
    %183 = vmatprep.subr.mxu0 0.0
    %184 = vmatpush1.msra.mxu0 0.0
    %185 = vmatprep.subr.mxu0 0.0
    %186 = vmatpush1.msra.mxu0 0.0
    %187 = vmatprep.subr.mxu0 0.0
    %188 = vmatpush1.msra.mxu0 0.0
    %189 = vmatprep.subr.mxu0 0.0
    %190 = vmatpush1.msra.mxu0 0.0
    %191 = vmatprep.subr.mxu0 0.0
    %192 = vmatpush1.msra.mxu0 0.0
    %193 = vmatprep.subr.mxu0 0.0
    %194 = vmatpush1.msra.mxu0 0.0
    %195 = vmatprep.subr.mxu0 0.0
    %196 = vmatpush1.msra.mxu0 0.0
    %197 = vmatprep.subr.mxu0 0.0
    %198 = vmatpush1.msra.mxu0 0.0
    %199 = vmatprep.subr.mxu0 0.0
    %200 = vmatpush1.msra.mxu0 0.0
    %201 = vmatprep.subr.mxu0 0.0
    %202 = vmatpush1.msra.mxu0 0.0
    %203 = vmatprep.subr.mxu0 0.0
    %204 = vmatpush1.msra.mxu0 0.0
    %205 = vmatprep.subr.mxu0 0.0
    %206 = vmatpush1.msra.mxu0 0.0
    %207 = vmatprep.subr.mxu0 0.0
    %208 = vmatpush1.msra.mxu0 0.0
    %209 = vmatprep.subr.mxu0 0.0
    %210 = vmatpush1.msra.mxu0 0.0
    %211 = vmatprep.subr.mxu0 0.0
    %212 = vmatpush1.msra.mxu0 0.0
    %213 = vmatprep.subr.mxu0 0.0
    %214 = vmatpush1.msra.mxu0 0.0
    %215 = vmatprep.subr.mxu0 0.0
    %216 = vmatpush1.msra.mxu0 0.0
    %217 = vmatprep.subr.mxu0 0.0
    %218 = vmatpush1.msra.mxu0 0.0
    %219 = vmatprep.subr.mxu0 0.0
    %220 = vmatpush1.msra.mxu0 0.0
    %221 = vmatprep.subr.mxu0 0.0
    %222 = vmatpush1.msra.mxu0 0.0
    %223 = vmatprep.subr.mxu0 0.0
    %224 = vmatpush1.msra.mxu0 0.0
    %225 = vmatprep.subr.mxu0 0.0
    %226 = vmatpush1.msra.mxu0 0.0
    %227 = vmatprep.subr.mxu0 0.0
    %228 = vmatpush1.msra.mxu0 0.0
    %229 = vmatprep.subr.mxu0 0.0
    %230 = vmatpush1.msra.mxu0 0.0
    %231 = vmatprep.mubr.f32.mxu0 0.0
    %232 = vmatmul.mubr.f32.gmra.mrb[0].mxu0 %v165
    %v233 = vpop.f32.mrb[0].mxu0
    %v234 = vadd.f32 %v161, %v233
    %v235 = vpop.f32.mrb[0].mxu0
    %236 = vdwg.mxu0
    %v237 = vmax.f32 %v234, 0.0
    %v238 = vld [vmem:[#allocation5] sm:$0xff]
    %v239 = vld [vmem:[#allocation5 + $0x8] sm:$0xff]
    %v240 = vld [vmem:[#allocation5 + $0x10] sm:$0xff]
    %v241 = vld [vmem:[#allocation5 + $0x18] sm:$0xff]
    %v242 = vld [vmem:[#allocation5 + $0x20] sm:$0xff]
    %v243 = vld [vmem:[#allocation5 + $0x28] sm:$0xff]
    %v244 = vld [vmem:[#allocation5 + $0x30] sm:$0xff]
    %v245 = vld [vmem:[#allocation5 + $0x38] sm:$0xff]
    %v246 = vld [vmem:[%s6] sm:$0x1]
    %v248 = vlaneseq
    %v249 = vshrl.u32 %v248, 7
    %v250 = vsub.s32 0, %v249
    %v251 = vrot.slane %v246, %v250
    %v254 = vsel %vm163, %v237, 0
    %256 = vmatprep.subr.mxu0 0.0
    %257 = vmatpush1.msra.mxu0 %v238
    %258 = vmatprep.subr.mxu0 0.0
    %259 = vmatpush1.msra.mxu0 %v239
    %260 = vmatprep.subr.mxu0 0.0
    %261 = vmatpush1.msra.mxu0 %v240
    %262 = vmatprep.subr.mxu0 0.0
    %263 = vmatpush1.msra.mxu0 %v241
    %264 = vmatprep.subr.mxu0 0.0
    %265 = vmatpush1.msra.mxu0 %v242
    %266 = vmatprep.subr.mxu0 0.0
    %267 = vmatpush1.msra.mxu0 %v243
    %268 = vmatprep.subr.mxu0 0.0
    %269 = vmatpush1.msra.mxu0 %v244
    %270 = vmatprep.subr.mxu0 0.0
    %271 = vmatpush1.msra.mxu0 %v245
    %272 = vmatprep.subr.mxu0 0.0
    %273 = vmatpush1.msra.mxu0 0.0
    %274 = vmatprep.subr.mxu0 0.0
    %275 = vmatpush1.msra.mxu0 0.0
    %276 = vmatprep.subr.mxu0 0.0
    %277 = vmatpush1.msra.mxu0 0.0
    %278 = vmatprep.subr.mxu0 0.0
    %279 = vmatpush1.msra.mxu0 0.0
    %280 = vmatprep.subr.mxu0 0.0
    %281 = vmatpush1.msra.mxu0 0.0
    %282 = vmatprep.subr.mxu0 0.0
    %283 = vmatpush1.msra.mxu0 0.0
    %284 = vmatprep.subr.mxu0 0.0
    %285 = vmatpush1.msra.mxu0 0.0
    %286 = vmatprep.subr.mxu0 0.0
    %287 = vmatpush1.msra.mxu0 0.0
    %288 = vmatprep.subr.mxu0 0.0
    %289 = vmatpush1.msra.mxu0 0.0
    %290 = vmatprep.subr.mxu0 0.0
    %291 = vmatpush1.msra.mxu0 0.0
    %292 = vmatprep.subr.mxu0 0.0
    %293 = vmatpush1.msra.mxu0 0.0
    %294 = vmatprep.subr.mxu0 0.0
    %295 = vmatpush1.msra.mxu0 0.0
    %296 = vmatprep.subr.mxu0 0.0
    %297 = vmatpush1.msra.mxu0 0.0
    %298 = vmatprep.subr.mxu0 0.0
    %299 = vmatpush1.msra.mxu0 0.0
    %300 = vmatprep.subr.mxu0 0.0
    %301 = vmatpush1.msra.mxu0 0.0
    %302 = vmatprep.subr.mxu0 0.0
    %303 = vmatpush1.msra.mxu0 0.0
    %304 = vmatprep.subr.mxu0 0.0
    %305 = vmatpush1.msra.mxu0 0.0
    %306 = vmatprep.subr.mxu0 0.0
    %307 = vmatpush1.msra.mxu0 0.0
    %308 = vmatprep.subr.mxu0 0.0
    %309 = vmatpush1.msra.mxu0 0.0
    %310 = vmatprep.subr.mxu0 0.0
    %311 = vmatpush1.msra.mxu0 0.0
    %312 = vmatprep.subr.mxu0 0.0
    %313 = vmatpush1.msra.mxu0 0.0
    %314 = vmatprep.subr.mxu0 0.0
    %315 = vmatpush1.msra.mxu0 0.0
    %316 = vmatprep.subr.mxu0 0.0
    %317 = vmatpush1.msra.mxu0 0.0
    %318 = vmatprep.subr.mxu0 0.0
    %319 = vmatpush1.msra.mxu0 0.0
    %320 = vmatprep.mubr.f32.mxu0 0.0
    %321 = vmatmul.mubr.f32.gmra.mrb[0].mxu0 %v254
    %v322 = vpop.f32.mrb[0].mxu0
    %v323 = vadd.f32 %v251, %v322
    %v324 = vpop.f32.mrb[0].mxu0
    %325 = vdwg.mxu0
    %v326 = vmax.f32 %v323, 0.0
    %v327 = vld [vmem:[%s7] sm:$0xff]
    %v328 = vld [vmem:[%s7 + $0x8] sm:$0xff]
    %v329 = vld [vmem:[%s7 + $0x10] sm:$0xff]
    %v330 = vld [vmem:[%s7 + $0x18] sm:$0xff]
    %v331 = vld [vmem:[%s7 + $0x20] sm:$0xff]
    %v332 = vld [vmem:[%s7 + $0x28] sm:$0xff]
    %v333 = vld [vmem:[%s7 + $0x30] sm:$0xff]
    %v334 = vld [vmem:[%s7 + $0x38] sm:$0xff]
    %v335 = vld [vmem:[%s8] sm:$0x1]
    %v337 = vlaneseq
    %v338 = vshrl.u32 %v337, 7
    %v339 = vsub.s32 0, %v338
    %v340 = vrot.slane %v335, %v339
    %v343 = vsel %vm163, %v326, 0
    %345 = vmatprep.subr.mxu0 0.0
    %346 = vmatpush1.msra.mxu0 %v327
    %347 = vmatprep.subr.mxu0 0.0
    %348 = vmatpush1.msra.mxu0 %v328
    %349 = vmatprep.subr.mxu0 0.0
    %350 = vmatpush1.msra.mxu0 %v329
    %351 = vmatprep.subr.mxu0 0.0
    %352 = vmatpush1.msra.mxu0 %v330
    %353 = vmatprep.subr.mxu0 0.0
    %354 = vmatpush1.msra.mxu0 %v331
    %355 = vmatprep.subr.mxu0 0.0
    %356 = vmatpush1.msra.mxu0 %v332
    %357 = vmatprep.subr.mxu0 0.0
    %358 = vmatpush1.msra.mxu0 %v333
    %359 = vmatprep.subr.mxu0 0.0
    %360 = vmatpush1.msra.mxu0 %v334
    %361 = vmatprep.subr.mxu0 0.0
    %362 = vmatpush1.msra.mxu0 0.0
    %363 = vmatprep.subr.mxu0 0.0
    %364 = vmatpush1.msra.mxu0 0.0
    %365 = vmatprep.subr.mxu0 0.0
    %366 = vmatpush1.msra.mxu0 0.0
    %367 = vmatprep.subr.mxu0 0.0
    %368 = vmatpush1.msra.mxu0 0.0
    %369 = vmatprep.subr.mxu0 0.0
    %370 = vmatpush1.msra.mxu0 0.0
    %371 = vmatprep.subr.mxu0 0.0
    %372 = vmatpush1.msra.mxu0 0.0
    %373 = vmatprep.subr.mxu0 0.0
    %374 = vmatpush1.msra.mxu0 0.0
    %375 = vmatprep.subr.mxu0 0.0
    %376 = vmatpush1.msra.mxu0 0.0
    %377 = vmatprep.subr.mxu0 0.0
    %378 = vmatpush1.msra.mxu0 0.0
    %379 = vmatprep.subr.mxu0 0.0
    %380 = vmatpush1.msra.mxu0 0.0
    %381 = vmatprep.subr.mxu0 0.0
    %382 = vmatpush1.msra.mxu0 0.0
    %383 = vmatprep.subr.mxu0 0.0
    %384 = vmatpush1.msra.mxu0 0.0
    %385 = vmatprep.subr.mxu0 0.0
    %386 = vmatpush1.msra.mxu0 0.0
    %387 = vmatprep.subr.mxu0 0.0
    %388 = vmatpush1.msra.mxu0 0.0
    %389 = vmatprep.subr.mxu0 0.0
    %390 = vmatpush1.msra.mxu0 0.0
    %391 = vmatprep.subr.mxu0 0.0
    %392 = vmatpush1.msra.mxu0 0.0
    %393 = vmatprep.subr.mxu0 0.0
    %394 = vmatpush1.msra.mxu0 0.0
    %395 = vmatprep.subr.mxu0 0.0
    %396 = vmatpush1.msra.mxu0 0.0
    %397 = vmatprep.subr.mxu0 0.0
    %398 = vmatpush1.msra.mxu0 0.0
    %399 = vmatprep.subr.mxu0 0.0
    %400 = vmatpush1.msra.mxu0 0.0
    %401 = vmatprep.subr.mxu0 0.0
    %402 = vmatpush1.msra.mxu0 0.0
    %403 = vmatprep.subr.mxu0 0.0
    %404 = vmatpush1.msra.mxu0 0.0
    %405 = vmatprep.subr.mxu0 0.0
    %406 = vmatpush1.msra.mxu0 0.0
    %407 = vmatprep.subr.mxu0 0.0
    %408 = vmatpush1.msra.mxu0 0.0
    %409 = vmatprep.mubr.f32.mxu0 0.0
    %410 = vmatmul.mubr.f32.gmra.mrb[0].mxu0 %v343
    %v411 = vpop.f32.mrb[0].mxu0
    %v412 = vadd.f32 %v340, %v411
    %v413 = vpop.f32.mrb[0].mxu0
    %414 = vdwg.mxu0
    %vm415 = vcmask 130048
    %416 = vst.msk [vmem:[#allocation7] sm:$0xff] %vm415, %v412
    // Predicated region
    $region46: #{tpu_custom_call.1} parent=1 // pred_check
      _
    $region47: #{tpu_custom_call.1} parent=1 // pred_check_branch
      %418 = sbr.rel (0) target = $region49
    $region48: #{tpu_custom_call.1} parent=1 // pred_region
      %s420 = ssub.s32 128, 128
      %421 = vsyncadd [#allocation4], %s420
      %s423 = sshll.u32 [#allocation7], 4
      %s424 = int_to_ptr.vmem [resolvable:$true] %s423
      %426 = dma.vmem_to_hbm [thread:$0]  %s424, 128, %s9, [#allocation4]
    $region49: #{tpu_custom_call.1} parent=1 // pred_fallthru
      _
    // Predicated region
    $region50: #{tpu_custom_call.1} parent=1 // pred_check
      _
    $region51: #{tpu_custom_call.1} parent=1 // pred_check_branch
      %428 = sbr.rel (0) target = $region53
    $region52: #{tpu_custom_call.1} parent=1 // pred_region
      %429 = dma.done [#allocation4], 128
    $region53: #{tpu_custom_call.1} parent=1 // pred_fallthru
      _
    %430 = vsyncpa [#allocation3], 1
    %431 = vsyncpa [#allocation6], 1
    %432 = vsyncpa [#allocation4], 1

</llo_original>
